<compile_context>
chip_gen: v5e
topology: v5e:2x2
jax: 0.10.0
libtpu: 0.0.40
codegen_flags: <defaults>
</compile_context>

<pallas_src>
import jax
import jax.numpy as jnp
from jax.experimental import pallas as pl
from jax.experimental.pallas import tpu as pltpu


def _add_one_kernel(x_ref, o_ref):
    # Elementwise hot path: whole VMEM tile at once on the VPU.
    o_ref[...] = x_ref[...] + jnp.asarray(1, dtype=x_ref.dtype)


_LANE = 128
# Explicit scoped-VMEM budget: 4 pipeline buffers (2 in + 2 out) of the largest
# block (6 MiB on v7x) fit in 24 MiB; 32 MiB leaves Mosaic scratch headroom and
# stays far below physical VMEM on every generation (v5e/v6e 128 MiB, v7x 64).
_VMEM_LIMIT_BYTES = 32 * 1024 * 1024


def _target_block_bytes() -> int:
    """Per-generation block size (larger HBM BW -> larger block to amortize
    the ~0.35 us per-grid-step overhead)."""
    try:
        kind = jax.devices()[0].device_kind.lower()
    except Exception:  # pragma: no cover - defensive
        kind = ""
    if "v7" in kind:
        return 6 * 1024 * 1024
    if "v5" in kind:
        return 2 * 1024 * 1024
    # v6e and unknown / future chips.
    return 4 * 1024 * 1024


def _sublane_multiple(dtype) -> int:
    # Sub-32-bit dtypes pack along sublanes; keep packed vregs fully dense.
    itemsize = jnp.dtype(dtype).itemsize
    return max(8, 32 // itemsize)


def _pallas_add_one_2d(x2d, block_rows, block_cols, donate=False):
    """Run the add-one kernel over a 2-D array with the given block shape."""
    rows, cols = x2d.shape
    grid = (pl.cdiv(rows, block_rows), pl.cdiv(cols, block_cols))
    return pl.pallas_call(
        _add_one_kernel,
        out_shape=jax.ShapeDtypeStruct((rows, cols), x2d.dtype),
        grid_spec=pltpu.PrefetchScalarGridSpec(
            num_scalar_prefetch=0,
            grid=grid,
            in_specs=[pl.BlockSpec((block_rows, block_cols), lambda i, j: (i, j))],
            out_specs=pl.BlockSpec((block_rows, block_cols), lambda i, j: (i, j)),
        ),
        compiler_params=pltpu.CompilerParams(
            dimension_semantics=("parallel", "parallel"),
            vmem_limit_bytes=_VMEM_LIMIT_BYTES,
        ),
        # Only beneficial when the caller donates the input buffer at the jit
        # boundary (removes the extra HBM output allocation / defensive copy).
        input_output_aliases={0: 0} if donate else {},
    )(x2d)


def tudui_forward(x, donate=False):
    """Pallas implementation of Tudui.forward: out = inp + 1.

    Accepts any shape / dtype; flatten + 2-D reshape are layout relabelings
    (no padding is ever materialized on the main paths).
    """
    orig_shape = x.shape
    dtype = x.dtype
    itemsize = jnp.dtype(dtype).itemsize

    flat = x.reshape(-1)  # row-major flatten
    n = flat.shape[0]
    if n == 0:
        return x

    sub = _sublane_multiple(dtype)
    target = _target_block_bytes()

    if n % _LANE == 0:
        # Main path: widest lane-dense column count that divides n exactly,
        # so the 2-D reshape is free and stores are unmasked full-width vst.
        cols = _LANE
        for cand in (32768, 16384, 8192, 4096, 2048, 1024, 512, 256):
            if n % cand == 0:
                cols = cand
                break
        rows = n // cols

        # Rows per block sized for ~target bytes, dtype-aligned sublanes.
        block_rows = max(sub, (target // (cols * itemsize)) // sub * sub)
        if block_rows >= rows:
            block_rows = rows  # full-extent block along rows: always legal
        else:
            # Best effort: round down to a divisor of rows (eliminates the
            # masked partial edge block); accept at most a 2x reduction.
            r = (block_rows // sub) * sub
            while r >= sub and r * 2 >= block_rows:
                if rows % r == 0:
                    block_rows = r
                    break
                r -= sub

        out2d = _pallas_add_one_2d(flat.reshape(rows, cols), block_rows, cols, donate)
        return out2d.reshape(orig_shape)

    if n % sub == 0:
        # Fallback A (not a multiple of 128, but a multiple of the sublane
        # pack): lay out as (sub, n/sub) so every vreg sublane is populated,
        # and tile along lanes.  Only the final block is masked.
        cols = n // sub
        block_cols = max(_LANE, (target // (sub * itemsize)) // _LANE * _LANE)
        if block_cols >= cols:
            block_cols = cols  # full-extent block along lanes: always legal
        out2d = _pallas_add_one_2d(flat.reshape(sub, cols), sub, block_cols, donate)
        return out2d.reshape(orig_shape)

    # Fallback B (n not a multiple of the sublane pack, rare/awkward sizes):
    # stream the multiple-of-sub bulk through the dense layout above and fix
    # the tiny (< sub <= 32 element) tail with a plain jnp add.
    n_bulk = (n // sub) * sub
    one = jnp.asarray(1, dtype=dtype)
    tail = flat[n_bulk:] + one
    if n_bulk == 0:
        return tail.reshape(orig_shape)
    cols = n_bulk // sub
    block_cols = max(_LANE, (target // (sub * itemsize)) // _LANE * _LANE)
    if block_cols >= cols:
        block_cols = cols
    bulk2d = _pallas_add_one_2d(flat[:n_bulk].reshape(sub, cols), sub, block_cols, donate)
    out_flat = jnp.concatenate([bulk2d.reshape(-1), tail])
    return out_flat.reshape(orig_shape)


if __name__ == "__main__":
    key = jax.random.PRNGKey(0)

    # Small NCHW-like input consistent with the course module.
    x = jax.random.normal(key, (2, 4, 16, 16), dtype=jnp.float32)
    out = jax.block_until_ready(tudui_forward(x))
    expected = x + 1.0
    assert out.shape == x.shape
    assert out.dtype == x.dtype
    assert jnp.allclose(out, expected, atol=1e-6), "mismatch vs reference (main path)"

    # Exercise the non-multiple-of-128 / non-multiple-of-sublane fallback too.
    y = jax.random.normal(jax.random.PRNGKey(1), (3, 5, 7), dtype=jnp.float32)
    out_y = jax.block_until_ready(tudui_forward(y))
    assert out_y.shape == y.shape and out_y.dtype == y.dtype
    assert jnp.allclose(out_y, y + 1.0, atol=1e-6), "mismatch vs reference (fallback)"

    print("KERNEL_OK")
</pallas_src>

<mosaic_0001>
module attributes {stable_mosaic.version = 11 : i64} {
  func.func @_add_one_kernel(%arg0: i32, %arg1: i32, %arg2: memref<1x2048xf32, #tpu.memory_space<vmem>>, %arg3: memref<1x2048xf32, #tpu.memory_space<vmem>>) attributes {dimension_semantics = [#tpu.dimension_semantics<parallel>, #tpu.dimension_semantics<parallel>], iteration_bounds = array<i64: 1, 1>, scalar_prefetch = 0 : i64, scratch_operands = 0 : i64, tpu.core_type = #tpu.core_type<tc>, window_params = [{transform_indices = @transform_0, window_bounds = array<i64: 1, 2048>}, {transform_indices = @transform_1, window_bounds = array<i64: 1, 2048>}]} {
    %c0 = arith.constant 0 : index
    %c0_0 = arith.constant 0 : index
    %0 = vector.load %arg2[%c0, %c0_0] : memref<1x2048xf32, #tpu.memory_space<vmem>>, vector<1x2048xf32>
    %cst = arith.constant 1.000000e+00 : f32
    %1 = vector.broadcast %cst : f32 to vector<1x2048xf32>
    %2 = arith.addf %0, %1 : vector<1x2048xf32>
    %c0_1 = arith.constant 0 : index
    %c0_2 = arith.constant 0 : index
    %3 = vector.load %arg3[%c0_1, %c0_2] : memref<1x2048xf32, #tpu.memory_space<vmem>>, vector<1x2048xf32>
    tpu.vector_store %arg3[%c0_1, %c0_2], %2 {strides = array<i32>} : memref<1x2048xf32, #tpu.memory_space<vmem>>, vector<1x2048xf32>,
    return
  }
  func.func @transform_0(%arg0: i32, %arg1: i32) -> (i32, i32) {
    %c0_i32 = arith.constant 0 : i32
    return %arg0, %arg1 : i32, i32
  }
  func.func @transform_1(%arg0: i32, %arg1: i32) -> (i32, i32) {
    %c0_i32 = arith.constant 0 : i32
    return %arg0, %arg1 : i32, i32
  }
}

</mosaic_0001>

<llo_original>
// kernel: tpu_custom_call.1
$region0: #{tpu_custom_call.1}
  #allocation0 [shape = 'u32[]', space=smem, size = 0x4, offset = 0x4, fixed_abs, tag = 'smem constant byte address 0x4 - core index']
  #allocation1 [shape = 'u32[72,128]{1,0:T(1,128)}', space=vmem, size = 0x9000, scoped, tag = 'internal scratch']
  %s0 = inlined_call_operand.hbm [shape: f32[1,2048], index: 0, kind: input, shape index: {}]
  %s1 = inlined_call_operand.hbm [shape: f32[1,2048], index: 1, kind: output, shape index: {}]
  %s2 = sld [smem:[#allocation0]]
  $region18: #{tpu_custom_call.1} parent=0
    _
  %s4 = ssub.s32 1, %s2
  %s5 = scalar_select 0, %s4, %s2
  $region1: #{tpu_custom_call.1} parent=0
    #allocation2 [shape = 'u8[8192]{0}', space=vmem, size = 0x2000, scoped, tag = 'input window, operand 0, single buffered']
    #allocation3 [shape = 's32[1]{0}', space=sflag, size = 0x4, scoped, tag = 'scoped memory for tpu_custom_call.1']
    #allocation4 [shape = 's32[1]{0}', space=sflag, size = 0x4, scoped, tag = 'scoped memory for tpu_custom_call.1']
    #allocation5 [shape = 'u8[8192]{0}', space=vmem, size = 0x2000, scoped, tag = 'output window, operand 0, single buffered']
    %6 = vsyncpa [#allocation3], 0
    %7 = vsyncpa [#allocation4], 0
    // Predicated region
    $region2: #{tpu_custom_call.1} parent=1 // pred_check
      _
    $region3: #{tpu_custom_call.1} parent=1 // pred_check_branch
      %9 = sbr.rel (0) target = $region5
    $region4: #{tpu_custom_call.1} parent=1 // pred_region
      %11 = vsyncadd [#allocation3], 0
      %s13 = sshll.u32 %s0, 4
      %s14 = int_to_ptr.hbm [resolvable:$true] %s13
      %s15 = sshll.u32 [#allocation2], 4
      %s16 = int_to_ptr.vmem [resolvable:$true] %s15
      %18 = dma.hbm_to_vmem [thread:$0]  %s14, 256, %s16, [#allocation3]
    $region5: #{tpu_custom_call.1} parent=1 // pred_fallthru
      _
    // Predicated region
    $region6: #{tpu_custom_call.1} parent=1 // pred_check
      _
    $region7: #{tpu_custom_call.1} parent=1 // pred_check_branch
      %20 = sbr.rel (0) target = $region9
    $region8: #{tpu_custom_call.1} parent=1 // pred_region
      %22 = dma.done [#allocation3], 256
    $region9: #{tpu_custom_call.1} parent=1 // pred_fallthru
      _
    %v23 = vld [vmem:[#allocation2] sm:$0xff]
    %v24 = vld [vmem:[#allocation2 + $0x8] sm:$0xff]
    %v25 = vadd.f32 %v23, 1.0
    %v26 = vadd.f32 %v24, 1.0
    %27 = vst [vmem:[#allocation5] sm:$0xff] %v25
    %28 = vst [vmem:[#allocation5 + $0x8] sm:$0xff] %v26
    // Predicated region
    $region10: #{tpu_custom_call.1} parent=1 // pred_check
      _
    $region11: #{tpu_custom_call.1} parent=1 // pred_check_branch
      %30 = sbr.rel (0) target = $region13
    $region12: #{tpu_custom_call.1} parent=1 // pred_region
      %32 = vsyncadd [#allocation4], 0
      %s34 = sshll.u32 [#allocation5], 4
      %s35 = int_to_ptr.vmem [resolvable:$true] %s34
      %s36 = sshll.u32 %s1, 4
      %s37 = int_to_ptr.hbm [resolvable:$true] %s36
      %39 = dma.vmem_to_hbm [thread:$0]  %s35, 256, %s37, [#allocation4]
    $region13: #{tpu_custom_call.1} parent=1 // pred_fallthru
      _
    // Predicated region
    $region14: #{tpu_custom_call.1} parent=1 // pred_check
      _
    $region15: #{tpu_custom_call.1} parent=1 // pred_check_branch
      %41 = sbr.rel (0) target = $region17
    $region16: #{tpu_custom_call.1} parent=1 // pred_region
      %43 = dma.done [#allocation4], 256
    $region17: #{tpu_custom_call.1} parent=1 // pred_fallthru
      _
    %44 = vsyncpa [#allocation3], 1
    %45 = vsyncpa [#allocation4], 1

</llo_original>
